<compile_context>
chip_gen: v6e
topology: v6e:2x2x1
jax: 0.10.0
libtpu: 0.0.40
codegen_flags: <defaults>
</compile_context>

<pallas_src>
import functools

import jax
import jax.numpy as jnp
from jax.experimental import pallas as pl
from jax.experimental.pallas import tpu as pltpu


def _conv_bn_relu_kernel(x_ref, w_ref, b_ref, o_ref, *, KH, Ho, Nb):
    """One batch-block step of conv(stride=1) + folded-BN bias + ReLU.

    x_ref: (Nb, Hp, Kp)   bf16 padded input rows, Kp = pad(Wp*Cin, 128)
    w_ref: (KH, Kp, Np)   bf16 structured (Toeplitz-over-W) weight, BN scale folded in
    b_ref: (1, Np)        f32 BN bias tiled over W (padded cols exactly 0)
    o_ref: (Nb, Ho, Np)   output rows, lane-dense last dim, Np = pad(Wo*Cout, 128)
    """
    kp = x_ref.shape[-1]
    ncols_p = o_ref.shape[-1]
    m = Nb * Ho

    acc = jnp.zeros((m, ncols_p), jnp.float32)
    # KH matmuls with contraction depth Kp and batch-packed M = Nb*Ho.  Ref slices
    # only (plain offset loads); the (Nb, Ho, Kp) -> (Nb*Ho, Kp) collapse is
    # layout-preserving because Ho is a multiple of 8.
    for kh in range(KH):                                   # static unroll, KH tiny
        lhs = x_ref[:, kh:kh + Ho, :].reshape(m, kp)
        acc = acc + jnp.dot(lhs, w_ref[kh], preferred_element_type=jnp.float32)

    # Epilogue in f32 (v5e VPU has no bf16): bias add + ReLU, then cast + full-width
    # unmasked store.
    y = jnp.maximum(acc + b_ref[...], 0.0)
    o_ref[...] = y.reshape(Nb, Ho, ncols_p).astype(o_ref.dtype)


def _pick_batch_block(n, ho, *, target_m=256):
    """Largest divisor Nb of n with Nb*ho <= target_m (maximizes MXU M-fill).

    If that would leave a single-step grid and n is even, split the batch in two so
    both v7x TensorCores get a parallel grid step (negligible cost on v5e/v6e).
    """
    nb = max(1, min(n, max(1, target_m // max(ho, 1))))
    while n % nb:
        nb -= 1
    if n // nb == 1 and n % 2 == 0:
        nb = n // 2
    return nb


def basic_conv2d(x_nchw, weight_oihw, gamma, beta, running_mean, running_var,
                 *, padding=1, eps=1e-3, batch_block=None,
                 compute_dtype=jnp.bfloat16, out_dtype=None):
    """BasicConv2d forward: conv(bias=False, stride=1) -> BN(eps, running stats) -> ReLU.

    NCHW in / NCHW out, matching the PyTorch module.
    """
    N, Cin, H, W = x_nchw.shape
    Cout, Cin_w, KH, KW = weight_oihw.shape
    assert Cin == Cin_w
    out_dtype = x_nchw.dtype if out_dtype is None else out_dtype
    # Only stride=1 / symmetric padding / no dilation (BasicConv2d default usage).

    Hp, Wp = H + 2 * padding, W + 2 * padding
    Ho, Wo = Hp - KH + 1, Wp - KW + 1

    Nb = batch_block if batch_block is not None else _pick_batch_block(N, Ho)
    assert N % Nb == 0
    n_blocks = N // Nb

    # ---- fold BN scale into the conv weights (one-time, f32) ----
    scale = gamma * jax.lax.rsqrt(running_var + eps)              # (Cout,)
    bias = beta - running_mean * scale                            # (Cout,)
    w_scaled = weight_oihw * scale[:, None, None, None]           # (Cout,Cin,KH,KW)
    w_khwcio = jnp.transpose(w_scaled, (2, 3, 1, 0))              # (KH,KW,Cin,Cout)

    # ---- structured (Toeplitz-over-W) weight: (KH, Kp, Np) ----
    # W_struct[kh, wo+kw, ci, wo, co] = w_khwcio[kh, kw, ci, co]
    p_idx = jnp.arange(Wp)[:, None]
    w_idx = jnp.arange(Wo)[None, :]
    w_struct = jnp.zeros((KH, Wp, Cin, Wo, Cout), jnp.float32)
    for kw in range(KW):
        sel = (p_idx == w_idx + kw).astype(jnp.float32)           # (Wp, Wo)
        w_struct = w_struct + jnp.einsum("pw,kco->kpcwo", sel, w_khwcio[:, kw])

    kdim = Wp * Cin
    kp = ((kdim + 127) // 128) * 128                              # full-lane x loads
    ncols = Wo * Cout
    ncols_p = ((ncols + 127) // 128) * 128                        # lane-dense output
    w_flat = w_struct.reshape(KH, kdim, ncols)
    w_flat = jnp.pad(w_flat, ((0, 0), (0, kp - kdim), (0, ncols_p - ncols)))
    w_flat = w_flat.astype(compute_dtype)

    bias_row = jnp.tile(bias, Wo)                                 # (Wo*Cout,)
    bias_row = jnp.pad(bias_row, (0, ncols_p - ncols))            # padded cols stay 0
    bias_row = bias_row.reshape(1, ncols_p).astype(jnp.float32)

    # ---- input: NCHW -> NHWC, spatial pad, flatten (W,Cin), pad lanes to Kp ----
    x_nhwc = jnp.transpose(x_nchw, (0, 2, 3, 1)).astype(compute_dtype)
    xp = jnp.pad(x_nhwc, ((0, 0), (padding, padding), (padding, padding), (0, 0)))
    xp = xp.reshape(N, Hp, kdim)
    xp = jnp.pad(xp, ((0, 0), (0, 0), (0, kp - kdim)))            # (N, Hp, Kp)

    kernel = functools.partial(_conv_bn_relu_kernel, KH=KH, Ho=Ho, Nb=Nb)

    # VMEM budget: double-buffered x/out blocks + single-buffered resident weight/bias.
    need = (2 * Nb * Hp * kp * jnp.dtype(compute_dtype).itemsize
            + 2 * Nb * Ho * ncols_p * jnp.dtype(out_dtype).itemsize
            + KH * kp * ncols_p * jnp.dtype(compute_dtype).itemsize
            + ncols_p * 4)
    # Clamp to 48 MiB so the same setting is safe on v7x (64 MiB physical); v5e/v6e
    # production builds can raise the clamp toward ~100 MiB.
    vmem_limit = int(min(max(4 * need, 16 * 1024 * 1024), 48 * 1024 * 1024))

    out = pl.pallas_call(
        kernel,
        out_shape=jax.ShapeDtypeStruct((N, Ho, ncols_p), out_dtype),
        grid=(n_blocks,),
        in_specs=[
            pl.BlockSpec((Nb, Hp, kp), lambda b: (b, 0, 0)),
            # Grid-invariant operands: whole array resident in VMEM (single copy,
            # no double-buffered pipeline waste).
            pl.BlockSpec(memory_space=pltpu.MemorySpace.VMEM),
            pl.BlockSpec(memory_space=pltpu.MemorySpace.VMEM),
        ],
        out_specs=pl.BlockSpec((Nb, Ho, ncols_p), lambda b: (b, 0, 0)),
        compiler_params=pltpu.CompilerParams(
            dimension_semantics=("parallel",),
            vmem_limit_bytes=vmem_limit,
        ),
    )(xp, w_flat, bias_row)

    out = out[:, :, :ncols].reshape(N, Ho, Wo, Cout)              # drop lane padding
    return jnp.transpose(out, (0, 3, 1, 2))                       # back to NCHW


def _reference(x, w, gamma, beta, mean, var, *, padding=1, eps=1e-3,
               compute_dtype=jnp.float32):
    """Pure-JAX reference: conv(bias=False) -> BN(running stats) -> ReLU."""
    scale = gamma * jax.lax.rsqrt(var + eps)
    bias = beta - mean * scale
    w_folded = (w * scale[:, None, None, None]).astype(compute_dtype)
    y = jax.lax.conv_general_dilated(
        x.astype(compute_dtype), w_folded, window_strides=(1, 1),
        padding=[(padding, padding), (padding, padding)],
        dimension_numbers=("NCHW", "OIHW", "NCHW"),
        preferred_element_type=jnp.float32,
    )
    y = y + bias.reshape(1, -1, 1, 1)
    return jnp.maximum(y, 0.0).astype(x.dtype)


if __name__ == "__main__":
    # BasicConv2d(in_channels=4, out_channels=8, kernel_size=3, padding=1)
    N, Cin, H, W = 4, 4, 16, 16
    Cout, KH, KW = 8, 3, 3
    padding = 1

    key = jax.random.PRNGKey(0)
    kx, kw_, kg, kb, km, kv = jax.random.split(key, 6)

    x = jax.random.normal(kx, (N, Cin, H, W), dtype=jnp.float32)
    fan_in = Cin * KH * KW
    weight = jax.random.normal(kw_, (Cout, Cin, KH, KW), dtype=jnp.float32) * (
        (2.0 / fan_in) ** 0.5
    )
    gamma = 1.0 + 0.1 * jax.random.normal(kg, (Cout,), dtype=jnp.float32)
    beta = 0.1 * jax.random.normal(kb, (Cout,), dtype=jnp.float32)
    running_mean = 0.1 * jax.random.normal(km, (Cout,), dtype=jnp.float32)
    running_var = 1.0 + 0.1 * jax.random.uniform(kv, (Cout,), dtype=jnp.float32)

    out = basic_conv2d(x, weight, gamma, beta, running_mean, running_var,
                       padding=padding, eps=1e-3)
    out = jax.block_until_ready(out)
    assert out.shape == (N, Cout, H, W)

    # Check vs. a reference with identical bf16 inputs / f32 accumulation.
    ref_bf16 = _reference(x, weight, gamma, beta, running_mean, running_var,
                          padding=padding, eps=1e-3, compute_dtype=jnp.bfloat16)
    err = jnp.max(jnp.abs(out - ref_bf16))
    assert jnp.allclose(out, ref_bf16, atol=2e-3, rtol=2e-3), f"bf16-matched err={err}"

    # Sanity check vs. full-f32 module semantics (difference = bf16 quantization only).
    ref_f32 = _reference(x, weight, gamma, beta, running_mean, running_var,
                         padding=padding, eps=1e-3, compute_dtype=jnp.float32)
    err32 = jnp.max(jnp.abs(out - ref_f32))
    assert jnp.allclose(out, ref_f32, atol=8e-2, rtol=5e-2), f"f32-semantics err={err32}"

    print("KERNEL_OK")
</pallas_src>

<mosaic_0001>
module attributes {stable_mosaic.version = 11 : i64} {
  func.func @_conv_bn_relu_kernel(%arg0: i32, %arg1: memref<2x18x128xbf16, #tpu.memory_space<vmem>>, %arg2: memref<3x128x128xbf16, #tpu.memory_space<vmem>>, %arg3: memref<1x128xf32, #tpu.memory_space<vmem>>, %arg4: memref<2x16x128xf32, #tpu.memory_space<vmem>>) attributes {dimension_semantics = [#tpu.dimension_semantics<parallel>], iteration_bounds = array<i64: 2>, scalar_prefetch = 0 : i64, scratch_operands = 0 : i64, tpu.core_type = #tpu.core_type<tc>, window_params = [{transform_indices = @transform_0, window_bounds = array<i64: 2, 18, 128>}, {pipeline_mode = #tpu.pipeline_mode<synchronous>, transform_indices = @transform_1, window_bounds = array<i64: 3, 128, 128>}, {pipeline_mode = #tpu.pipeline_mode<synchronous>, transform_indices = @transform_2, window_bounds = array<i64: 1, 128>}, {transform_indices = @transform_3, window_bounds = array<i64: 2, 16, 128>}]} {
    %cst = arith.constant 0.000000e+00 : f32
    %0 = vector.broadcast %cst : f32 to vector<32x128xf32>
    %c0 = arith.constant 0 : index
    %c0_0 = arith.constant 0 : index
    %c0_1 = arith.constant 0 : index
    %1 = vector.load %arg1[%c0, %c0_0, %c0_1] : memref<2x18x128xbf16, #tpu.memory_space<vmem>>, vector<2x16x128xbf16>
    %2 = vector.shape_cast %1 : vector<2x16x128xbf16> to vector<32x128xbf16>
    %c0_2 = arith.constant 0 : index
    %c0_3 = arith.constant 0 : index
    %c0_4 = arith.constant 0 : index
    %3 = vector.load %arg2[%c0_2, %c0_3, %c0_4] : memref<3x128x128xbf16, #tpu.memory_space<vmem>>, vector<1x128x128xbf16>
    %4 = vector.shape_cast %3 : vector<1x128x128xbf16> to vector<128x128xbf16>
    %cst_5 = arith.constant dense<0.000000e+00> : vector<32x128xf32>
    %5 = tpu.matmul %2, %4, %cst_5 {dimension_numbers = #tpu.dot_dimension_numbers<[1], [0], [0], [1], [0, 0, 1, 1], [], []>} : vector<32x128xbf16>, vector<128x128xbf16>, vector<32x128xf32> -> vector<32x128xf32>
    %6 = arith.addf %0, %5 : vector<32x128xf32>
    %c0_6 = arith.constant 0 : index
    %c1 = arith.constant 1 : index
    %c0_7 = arith.constant 0 : index
    %7 = vector.load %arg1[%c0_6, %c1, %c0_7] : memref<2x18x128xbf16, #tpu.memory_space<vmem>>, vector<2x16x128xbf16>
    %8 = vector.shape_cast %7 : vector<2x16x128xbf16> to vector<32x128xbf16>
    %c1_8 = arith.constant 1 : index
    %c0_9 = arith.constant 0 : index
    %c0_10 = arith.constant 0 : index
    %9 = vector.load %arg2[%c1_8, %c0_9, %c0_10] : memref<3x128x128xbf16, #tpu.memory_space<vmem>>, vector<1x128x128xbf16>
    %10 = vector.shape_cast %9 : vector<1x128x128xbf16> to vector<128x128xbf16>
    %cst_11 = arith.constant dense<0.000000e+00> : vector<32x128xf32>
    %11 = tpu.matmul %8, %10, %cst_11 {dimension_numbers = #tpu.dot_dimension_numbers<[1], [0], [0], [1], [0, 0, 1, 1], [], []>} : vector<32x128xbf16>, vector<128x128xbf16>, vector<32x128xf32> -> vector<32x128xf32>
    %12 = arith.addf %6, %11 : vector<32x128xf32>
    %c0_12 = arith.constant 0 : index
    %c2 = arith.constant 2 : index
    %c0_13 = arith.constant 0 : index
    %13 = vector.load %arg1[%c0_12, %c2, %c0_13] : memref<2x18x128xbf16, #tpu.memory_space<vmem>>, vector<2x16x128xbf16>
    %14 = vector.shape_cast %13 : vector<2x16x128xbf16> to vector<32x128xbf16>
    %c2_14 = arith.constant 2 : index
    %c0_15 = arith.constant 0 : index
    %c0_16 = arith.constant 0 : index
    %15 = vector.load %arg2[%c2_14, %c0_15, %c0_16] : memref<3x128x128xbf16, #tpu.memory_space<vmem>>, vector<1x128x128xbf16>
    %16 = vector.shape_cast %15 : vector<1x128x128xbf16> to vector<128x128xbf16>
    %cst_17 = arith.constant dense<0.000000e+00> : vector<32x128xf32>
    %17 = tpu.matmul %14, %16, %cst_17 {dimension_numbers = #tpu.dot_dimension_numbers<[1], [0], [0], [1], [0, 0, 1, 1], [], []>} : vector<32x128xbf16>, vector<128x128xbf16>, vector<32x128xf32> -> vector<32x128xf32>
    %18 = arith.addf %12, %17 : vector<32x128xf32>
    %c0_18 = arith.constant 0 : index
    %c0_19 = arith.constant 0 : index
    %19 = vector.load %arg3[%c0_18, %c0_19] : memref<1x128xf32, #tpu.memory_space<vmem>>, vector<1x128xf32>
    %20 = vector.broadcast %19 : vector<1x128xf32> to vector<32x128xf32>
    %21 = arith.addf %18, %20 : vector<32x128xf32>
    %cst_20 = arith.constant 0.000000e+00 : f32
    %22 = vector.broadcast %cst_20 : f32 to vector<32x128xf32>
    %23 = arith.maximumf %21, %22 : vector<32x128xf32>
    %24 = vector.shape_cast %23 : vector<32x128xf32> to vector<2x16x128xf32>
    %c0_21 = arith.constant 0 : index
    %c0_22 = arith.constant 0 : index
    %c0_23 = arith.constant 0 : index
    %25 = vector.load %arg4[%c0_21, %c0_22, %c0_23] : memref<2x16x128xf32, #tpu.memory_space<vmem>>, vector<2x16x128xf32>
    tpu.vector_store %arg4[%c0_21, %c0_22, %c0_23], %24 {strides = array<i32>} : memref<2x16x128xf32, #tpu.memory_space<vmem>>, vector<2x16x128xf32>,
    return
  }
  func.func @transform_0(%arg0: i32) -> (i32, i32, i32) {
    %c0_i32 = arith.constant 0 : i32
    %c0_i32_0 = arith.constant 0 : i32
    %c0_i32_1 = arith.constant 0 : i32
    return %arg0, %c0_i32, %c0_i32_0 : i32, i32, i32
  }
  func.func @transform_1(%arg0: i32) -> (i32, i32, i32) {
    %c0_i32 = arith.constant 0 : i32
    %c0_i32_0 = arith.constant 0 : i32
    %c0_i32_1 = arith.constant 0 : i32
    %c0_i32_2 = arith.constant 0 : i32
    return %c0_i32, %c0_i32_0, %c0_i32_1 : i32, i32, i32
  }
  func.func @transform_2(%arg0: i32) -> (i32, i32) {
    %c0_i32 = arith.constant 0 : i32
    %c0_i32_0 = arith.constant 0 : i32
    %c0_i32_1 = arith.constant 0 : i32
    return %c0_i32, %c0_i32_0 : i32, i32
  }
  func.func @transform_3(%arg0: i32) -> (i32, i32, i32) {
    %c0_i32 = arith.constant 0 : i32
    %c0_i32_0 = arith.constant 0 : i32
    %c0_i32_1 = arith.constant 0 : i32
    return %arg0, %c0_i32, %c0_i32_0 : i32, i32, i32
  }
}

</mosaic_0001>

<llo_original>
// kernel: tpu_custom_call.1
$region0: #{tpu_custom_call.1}
  #allocation0 [shape = 'u32[]', space=smem, size = 0x4, offset = 0x4, fixed_abs, tag = 'smem constant byte address 0x4 - core index']
  #allocation1 [shape = 'u32[144,128]{1,0:T(1,128)}', space=vmem, size = 0x12000, scoped, tag = 'internal scratch']
  %s0 = inlined_call_operand.vmem [shape: bf16[4,18,128], index: 0, kind: input, shape index: {}]
  %s1 = inlined_call_operand.hbm [shape: bf16[3,128,128], index: 1, kind: input, shape index: {}]
  %s2 = inlined_call_operand.vmem [shape: f32[1,128], index: 2, kind: input, shape index: {}]
  %s3 = inlined_call_operand.hbm [shape: f32[4,16,128], index: 3, kind: output, shape index: {}]
  %s4 = sld [smem:[#allocation0]]
  $region49: #{tpu_custom_call.1} parent=0
    _
  %s6 = ssub.s32 1, %s4
  %s7 = scalar_select 0, %s6, %s4
  $region1: #{tpu_custom_call.1} parent=0
    #allocation2 [shape = 'u8[98304]{0}', space=vmem, size = 0x18000, scoped, tag = 'input window, operand 1, single buffered']
    #allocation3 [shape = 's32[2]{0}', space=sflag, size = 0x8, scoped, tag = 'scoped memory for tpu_custom_call.1']
    #allocation4 [shape = 's32[2]{0}', space=sflag, size = 0x8, scoped, tag = 'scoped memory for tpu_custom_call.1']
    #allocation5 [shape = 'u8[32768]{0}', space=vmem, size = 0x8000, scoped, tag = 'output window, operand 0']
    %8 = vsyncpa [#allocation3], 0
    %9 = vsyncpa [#allocation4], 0
    %s10 = scalar_lea.sflag [#allocation4], 1
    %11 = vsyncpa %s10, 0
    loop: start=0, step=1, limit=4
    $region2: #{tpu_custom_call.1} parent=1 // loop_pre_header
      _
    $region3: #{tpu_custom_call.1} parent=1 // loop_header
      %s13 = sphi 0, %s17
      %p14 = scmp.ge.s32.totalorder %s13, 4
      %s23 = sphi 0, %s25
      %s26 = sphi 0, %s23
      %s27 = sphi 0, %s26
      %s43 = sphi 0, %s27
      %s47 = sphi 0, %s47
      %s49 = sphi 0, %s47
      %s50 = sphi 0, %s49
      %s64 = sphi 0, %s50
      %s68 = sphi 0, %s68
      %s70 = sphi 0, %s68
      %s71 = sphi 0, %s70
      %s85 = sphi 0, %s71
      %s91 = sphi 0, %s93
      %s94 = sphi 0, %s91
      %s95 = sphi 0, %s94
      %s111 = sphi 0, %s95
    $region4: #{tpu_custom_call.1} parent=1 // loop_header_branch
      %16 = sbr.rel (%p14) target = $region8
    $region5: #{tpu_custom_call.1} parent=1 // loop_body
      %s18 = ssub.s32 %s13, 1
      %s19 = ssub.s32 %s13, 2
      %s20 = sadd.s32 %s13, 1
      %s21 = ssub.s32 %s13, %s20
      %p22 = scmp.eq.s32.totalorder %s21, 0
      %s24 = sadd.s32 %s23, 1
      %s25 = scalar_select %p22, %s23, %s24
      %p28 = pneg %p22
      %p29 = scmp.eq.s32.totalorder %s13, 1
      %p30 = por %p28, %p29
      %p31 = scmp.ne.s32.totalorder %s23, %s26
      %p32 = scmp.eq.s32.totalorder %s13, 0
      %p33 = por %p31, %p32
      %p34 = scmp.ne.s32.totalorder %s23, %s26
      %p35 = scmp.eq.s32.totalorder %s18, 1
      %p36 = por %p34, %p35
      %p37 = scmp.ne.s32.totalorder %s26, %s27
      %p38 = scmp.eq.s32.totalorder %s18, 0
      %p39 = por %p37, %p38
      %p40 = scmp.ne.s32.totalorder %s26, %s27
      %p41 = scmp.eq.s32.totalorder %s19, 1
      %p42 = por %p40, %p41
      %p44 = scmp.ne.s32.totalorder %s27, %s43
      %p45 = scmp.eq.s32.totalorder %s19, 0
      %p46 = por %p44, %p45
      %s48 = sadd.s32 %s47, 1
      %p51 = scmp.eq.s32.totalorder %s13, 1
      %p52 = scmp.ne.s32.totalorder %s47, %s49
      %p53 = scmp.eq.s32.totalorder %s13, 0
      %p54 = por %p52, %p53
      %p55 = scmp.ne.s32.totalorder %s47, %s49
      %p56 = scmp.eq.s32.totalorder %s18, 1
      %p57 = por %p55, %p56
      %p58 = scmp.ne.s32.totalorder %s49, %s50
      %p59 = scmp.eq.s32.totalorder %s18, 0
      %p60 = por %p58, %p59
      %p61 = scmp.ne.s32.totalorder %s49, %s50
      %p62 = scmp.eq.s32.totalorder %s19, 1
      %p63 = por %p61, %p62
      %p65 = scmp.ne.s32.totalorder %s50, %s64
      %p66 = scmp.eq.s32.totalorder %s19, 0
      %p67 = por %p65, %p66
      %s69 = sadd.s32 %s68, 1
      %p72 = scmp.eq.s32.totalorder %s13, 1
      %p73 = scmp.ne.s32.totalorder %s68, %s70
      %p74 = scmp.eq.s32.totalorder %s13, 0
      %p75 = por %p73, %p74
      %p76 = scmp.ne.s32.totalorder %s68, %s70
      %p77 = scmp.eq.s32.totalorder %s18, 1
      %p78 = por %p76, %p77
      %p79 = scmp.ne.s32.totalorder %s70, %s71
      %p80 = scmp.eq.s32.totalorder %s18, 0
      %p81 = por %p79, %p80
      %p82 = scmp.ne.s32.totalorder %s70, %s71
      %p83 = scmp.eq.s32.totalorder %s19, 1
      %p84 = por %p82, %p83
      %p86 = scmp.ne.s32.totalorder %s71, %s85
      %p87 = scmp.eq.s32.totalorder %s19, 0
      %p88 = por %p86, %p87
      %s89 = ssub.s32 %s13, %s20
      %p90 = scmp.eq.s32.totalorder %s89, 0
      %s92 = sadd.s32 %s91, 1
      %s93 = scalar_select %p90, %s91, %s92
      %p96 = pneg %p90
      %p97 = scmp.eq.s32.totalorder %s13, 1
      %p98 = por %p96, %p97
      %p99 = scmp.ne.s32.totalorder %s91, %s94
      %p100 = scmp.eq.s32.totalorder %s13, 0
      %p101 = por %p99, %p100
      %p102 = scmp.ne.s32.totalorder %s91, %s94
      %p103 = scmp.eq.s32.totalorder %s18, 1
      %p104 = por %p102, %p103
      %p105 = scmp.ne.s32.totalorder %s94, %s95
      %p106 = scmp.eq.s32.totalorder %s18, 0
      %p107 = por %p105, %p106
      %p108 = scmp.ne.s32.totalorder %s94, %s95
      %p109 = scmp.eq.s32.totalorder %s19, 1
      %p110 = por %p108, %p109
      %p112 = scmp.ne.s32.totalorder %s95, %s111
      %p113 = scmp.eq.s32.totalorder %s19, 0
      %p114 = por %p112, %p113
      %p115 = scmp.le.s32.totalorder 1, %s13
      %p116 = scmp.lt.s32.totalorder %s13, 3
      %p117 = pnand %p115, %p116
      %p118 = pneg %p117
      // Predicated region
      $region9: #{tpu_custom_call.1} parent=5 // pred_check
        _
      $region10: #{tpu_custom_call.1} parent=5 // pred_check_branch
        %120 = sbr.rel (%p117) target = $region12
      $region11: #{tpu_custom_call.1} parent=5 // pred_region
        %s121 = ssub.s32 %s13, 1
        // Predicated region
        $region13: #{tpu_custom_call.1} parent=11 // pred_check
          %p122 = pneg %p60
        $region14: #{tpu_custom_call.1} parent=11 // pred_check_branch
          %124 = sbr.rel (%p122) target = $region16
        $region15: #{tpu_custom_call.1} parent=11 // pred_region
          %s126 = ssub.s32 3072, 3072
          %127 = vsyncadd [#allocation3], %s126
          %s128 = sshll.u32 [#allocation2], 4
          %s129 = int_to_ptr.vmem [resolvable:$true] %s128
          %134 = dma.hbm_to_vmem [thread:$0]  %s1, 3072, %s129, [#allocation3], 64, 64, 4
        $region16: #{tpu_custom_call.1} parent=11 // pred_fallthru
          _
        // Predicated region
        $region17: #{tpu_custom_call.1} parent=11 // pred_check
          %p135 = pneg %p81
        $region18: #{tpu_custom_call.1} parent=11 // pred_check_branch
          %137 = sbr.rel (%p135) target = $region20
        $region19: #{tpu_custom_call.1} parent=11 // pred_region
          _
        $region20: #{tpu_custom_call.1} parent=11 // pred_fallthru
          _
      $region12: #{tpu_custom_call.1} parent=5 // pred_fallthru
        _
      %p138 = scmp.lt.s32.totalorder %s13, 2
      // Predicated region
      $region21: #{tpu_custom_call.1} parent=5 // pred_check
        %p139 = pneg %p138
      $region22: #{tpu_custom_call.1} parent=5 // pred_check_branch
        %141 = sbr.rel (%p139) target = $region24
      $region23: #{tpu_custom_call.1} parent=5 // pred_region
        // Predicated region
        $region25: #{tpu_custom_call.1} parent=23 // pred_check
          %p142 = pneg %p33
        $region26: #{tpu_custom_call.1} parent=23 // pred_check_branch
          %144 = sbr.rel (%p142) target = $region28
        $region27: #{tpu_custom_call.1} parent=23 // pred_region
          %s145 = smul.u32 2, %s13
          %p146 = scmp.lt.s32.totalorder %s145, 3
          %s147 = scalar_select %p146, %s145, 3
          %s148 = smul.addr %s147, 3
          %s149 = smul.addr %s148, 4
          %s150 = scalar_lea.vmem %s0, %s149
          %s151 = smul.u32 2, %s13
        $region28: #{tpu_custom_call.1} parent=23 // pred_fallthru
          _
      $region24: #{tpu_custom_call.1} parent=5 // pred_fallthru
        _
      %p152 = scmp.le.s32.totalorder 1, %s13
      %p153 = scmp.lt.s32.totalorder %s13, 3
      %p154 = pnand %p152, %p153
      %p155 = pneg %p154
      // Predicated region
      $region29: #{tpu_custom_call.1} parent=5 // pred_check
        _
      $region30: #{tpu_custom_call.1} parent=5 // pred_check_branch
        %157 = sbr.rel (%p154) target = $region32
      $region31: #{tpu_custom_call.1} parent=5 // pred_region
        %s158 = ssub.s32 %s13, 1
        // Predicated region
        $region33: #{tpu_custom_call.1} parent=31 // pred_check
          %p159 = pneg %p60
        $region34: #{tpu_custom_call.1} parent=31 // pred_check_branch
          %161 = sbr.rel (%p159) target = $region36
        $region35: #{tpu_custom_call.1} parent=31 // pred_region
          %162 = dma.done [#allocation3], 3072
        $region36: #{tpu_custom_call.1} parent=31 // pred_fallthru
          _
        %s163 = smul.u32 2, %s18
        %p164 = scmp.lt.s32.totalorder %s163, 3
        %s165 = scalar_select %p164, %s163, 3
        %s166 = smul.addr %s165, 3
        %s167 = smul.addr %s166, 4
        %s168 = scalar_lea.vmem %s0, %s167
        %p169 = pneg %p39
        %p170 = pneg %p36
        %p171 = pneg %p60
        %p172 = pneg %p57
        %p173 = pneg %p81
        %p174 = pneg %p78
        %p175 = pneg %p107
        %p176 = pneg %p104
        %s177 = sand.u32 %s94, 1
        %s178 = scalar_lea.sflag [#allocation4], %s177
        %s179 = sand.u32 %s94, 1
        %s180 = smul.addr %s179, 32
        %s181 = scalar_lea.vmem [#allocation5], %s180
        %s182 = smul.u32 2, %s18
        %p183 = scmp.lt.s32.totalorder %s182, 3
        %s184 = scalar_select %p183, %s182, 3
        %s185 = smul.addr %s184, 3
        %s186 = smul.addr %s185, 4
        %s187 = scalar_lea.vmem %s0, %s186
        %s188 = smul.u32 2, %s18
        %s189 = smul.u32 2, %s18
        %v191 = vld [vmem:[%s187] sm:$0xf]
        %v192 = vld [vmem:[%s187 + $0x4] sm:$0xf]
        %v193 = vld [vmem:[%s187 + $0xc] sm:$0xf]
        %v194 = vld [vmem:[%s187 + $0x10] sm:$0xf]
        %v195 = vld [vmem:[#allocation2] sm:$0xf]
        %v196 = vld [vmem:[#allocation2 + $0x4] sm:$0xf]
        %v197 = vld [vmem:[#allocation2 + $0x8] sm:$0xf]
        %v198 = vld [vmem:[#allocation2 + $0xc] sm:$0xf]
        %v199 = vld [vmem:[#allocation2 + $0x10] sm:$0xf]
        %v200 = vld [vmem:[#allocation2 + $0x14] sm:$0xf]
        %v201 = vld [vmem:[#allocation2 + $0x18] sm:$0xf]
        %v202 = vld [vmem:[#allocation2 + $0x1c] sm:$0xf]
        %v203 = vld [vmem:[#allocation2 + $0x20] sm:$0xf]
        %v204 = vld [vmem:[#allocation2 + $0x24] sm:$0xf]
        %v205 = vld [vmem:[#allocation2 + $0x28] sm:$0xf]
        %v206 = vld [vmem:[#allocation2 + $0x2c] sm:$0xf]
        %v207 = vld [vmem:[#allocation2 + $0x30] sm:$0xf]
        %v208 = vld [vmem:[#allocation2 + $0x34] sm:$0xf]
        %v209 = vld [vmem:[#allocation2 + $0x38] sm:$0xf]
        %v210 = vld [vmem:[#allocation2 + $0x3c] sm:$0xf]
        %v211 = vld [vmem:[%s187 + $0x8] sm:$0x1]
        %v212 = vld [vmem:[%s187 + $0x14] sm:$0x1]
        %vm213 = vsmask.f32 3328
        %vm214 = vsmask.f32 7440
        %vm215 = vmor %vm213, %vm214
        %v217 = vshrl.u32 %v191, 16
        %v219 = vrot.slane %v217, 4
        %v220 = vshll.u32 %v191, 16
        %v222 = vrot.slane %v220, 5
        %v223 = vor.u32 %v219, %v222
        %v224 = vrot.slane %v223, 4
        %v226 = vshll.u32 %v192, 16
        %v228 = vrot.slane %v226, 5
        %v229 = vsel %vm215, %v224, %v228
        %v230 = vshrl.u32 %v192, 16
        %v232 = vrot.slane %v230, 4
        %v233 = vor.u32 %v232, %v228
        %v234 = vrot.slane %v233, 4
        %v236 = vshll.u32 %v211, 16
        %v238 = vrot.slane %v236, 5
        %v239 = vsel %vm215, %v234, %v238
        %v241 = vshrl.u32 %v193, 16
        %v243 = vrot.slane %v241, 4
        %v244 = vshll.u32 %v193, 16
        %v246 = vrot.slane %v244, 5
        %v247 = vor.u32 %v243, %v246
        %v248 = vrot.slane %v247, 4
        %v250 = vshll.u32 %v194, 16
        %v252 = vrot.slane %v250, 5
        %v253 = vsel %vm215, %v248, %v252
        %v254 = vshrl.u32 %v194, 16
        %v256 = vrot.slane %v254, 4
        %v257 = vor.u32 %v256, %v252
        %v258 = vrot.slane %v257, 4
        %v260 = vshll.u32 %v212, 16
        %v262 = vrot.slane %v260, 5
        %v263 = vsel %vm215, %v258, %v262
        %s264 = scalar_lea.vmem [#allocation2], 64
        %v265 = vld [vmem:[%s264] sm:$0xf]
        %v266 = vld [vmem:[%s264 + $0x4] sm:$0xf]
        %v267 = vld [vmem:[%s264 + $0x8] sm:$0xf]
        %v268 = vld [vmem:[%s264 + $0xc] sm:$0xf]
        %v269 = vld [vmem:[%s264 + $0x10] sm:$0xf]
        %v270 = vld [vmem:[%s264 + $0x14] sm:$0xf]
        %v271 = vld [vmem:[%s264 + $0x18] sm:$0xf]
        %v272 = vld [vmem:[%s264 + $0x1c] sm:$0xf]
        %v273 = vld [vmem:[%s264 + $0x20] sm:$0xf]
        %v274 = vld [vmem:[%s264 + $0x24] sm:$0xf]
        %v275 = vld [vmem:[%s264 + $0x28] sm:$0xf]
        %v276 = vld [vmem:[%s264 + $0x2c] sm:$0xf]
        %v277 = vld [vmem:[%s264 + $0x30] sm:$0xf]
        %v278 = vld [vmem:[%s264 + $0x34] sm:$0xf]
        %v279 = vld [vmem:[%s264 + $0x38] sm:$0xf]
        %v280 = vld [vmem:[%s264 + $0x3c] sm:$0xf]
        %v281 = vunpack.c.l.b16 %v229
        %v282 = vunpack.c.l.b16 %v239
        %v283 = vunpack.c.l.b16 %v253
        %v284 = vunpack.c.l.b16 %v263
        %v285 = vpack.c.b16 %v282, %v281
        %v286 = vpack.c.b16 %v284, %v283
        %v305 = vunpack.c.l.b16 %v265
        %v306 = vunpack.c.l.b16 %v266
        %v307 = vunpack.c.l.b16 %v267
        %v308 = vunpack.c.l.b16 %v268
        %v309 = vunpack.c.l.b16 %v269
        %v310 = vunpack.c.l.b16 %v270
        %v311 = vunpack.c.l.b16 %v271
        %v312 = vunpack.c.l.b16 %v272
        %v313 = vunpack.c.l.b16 %v273
        %v314 = vunpack.c.l.b16 %v274
        %v315 = vunpack.c.l.b16 %v275
        %v316 = vunpack.c.l.b16 %v276
        %v317 = vunpack.c.l.b16 %v277
        %v318 = vunpack.c.l.b16 %v278
        %v319 = vunpack.c.l.b16 %v279
        %v320 = vunpack.c.l.b16 %v280
        %v321 = vpack.c.b16 %v306, %v305
        %v322 = vpack.c.b16 %v308, %v307
        %v323 = vpack.c.b16 %v310, %v309
        %v324 = vpack.c.b16 %v312, %v311
        %v325 = vpack.c.b16 %v314, %v313
        %v326 = vpack.c.b16 %v316, %v315
        %v327 = vpack.c.b16 %v318, %v317
        %v328 = vpack.c.b16 %v320, %v319
        %337 = vmatprep.subr.bf16.mxu0 0
        %338 = vmatpush1.bf16.msra.mxu0 %v328
        %339 = vmatprep.subr.bf16.mxu0 0
        %340 = vmatpush1.bf16.msra.mxu0 %v327
        %341 = vmatprep.subr.bf16.mxu0 0
        %342 = vmatpush1.bf16.msra.mxu0 %v326
        %343 = vmatprep.subr.bf16.mxu0 0
        %344 = vmatpush1.bf16.msra.mxu0 %v325
        %345 = vmatprep.subr.bf16.mxu0 0
        %346 = vmatpush1.bf16.msra.mxu0 %v324
        %347 = vmatprep.subr.bf16.mxu0 0
        %348 = vmatpush1.bf16.msra.mxu0 %v323
        %349 = vmatprep.subr.bf16.mxu0 0
        %350 = vmatpush1.bf16.msra.mxu0 %v322
        %351 = vmatprep.subr.bf16.mxu0 0
        %352 = vmatpush1.bf16.msra.mxu0 %v321
        %353 = vmatprep.subr.bf16.mxu0 0
        %354 = vmatpush2.bf16.msra.mxu0 0
        %355 = vmatprep.subr.bf16.mxu0 0
        %356 = vmatpush2.bf16.msra.mxu0 0
        %357 = vmatprep.subr.bf16.mxu0 0
        %358 = vmatpush2.bf16.msra.mxu0 0
        %359 = vmatprep.subr.bf16.mxu0 0
        %360 = vmatpush2.bf16.msra.mxu0 0
        %361 = vmatprep.subr.bf16.mxu0 0
        %362 = vmatpush2.bf16.msra.mxu0 0
        %363 = vmatprep.subr.bf16.mxu0 0
        %364 = vmatpush2.bf16.msra.mxu0 0
        %365 = vmatprep.subr.bf16.mxu0 0
        %366 = vmatpush2.bf16.msra.mxu0 0
        %367 = vmatprep.subr.bf16.mxu0 0
        %368 = vmatpush2.bf16.msra.mxu0 0
        %369 = vmatprep.mubr.bf16.mxu0 0
        %370 = vmatmul.mubr.bf16.gmra.mxu0 %v285
        %v371 = vpop.f32.mrf.mxu0
        %v372 = vadd.f32 0.0, %v371
        %v373 = vpop.f32.mrf.mxu0
        %v374 = vpop.f32.mrf.mxu0
        %v375 = vadd.f32 0.0, %v374
        %v376 = vpop.f32.mrf.mxu0
        %377 = vmatprep.mubr.bf16.mxu0 0
        %378 = vmatmul.mubr.bf16.gmra.mxu0 %v286
        %v379 = vpop.f32.mrf.mxu0
        %v380 = vadd.f32 0.0, %v379
        %v381 = vpop.f32.mrf.mxu0
        %v382 = vpop.f32.mrf.mxu0
        %v383 = vadd.f32 0.0, %v382
        %v384 = vpop.f32.mrf.mxu0
        %385 = vdwg.mxu0
        %v390 = vunpack.c.l.b16 %v191
        %v391 = vunpack.c.l.b16 %v192
        %v392 = vunpack.c.l.b16 %v193
        %v393 = vunpack.c.l.b16 %v194
        %v394 = vpack.c.b16 %v391, %v390
        %v395 = vpack.c.b16 %v393, %v392
        %v414 = vunpack.c.l.b16 %v195
        %v415 = vunpack.c.l.b16 %v196
        %v416 = vunpack.c.l.b16 %v197
        %v417 = vunpack.c.l.b16 %v198
        %v418 = vunpack.c.l.b16 %v199
        %v419 = vunpack.c.l.b16 %v200
        %v420 = vunpack.c.l.b16 %v201
        %v421 = vunpack.c.l.b16 %v202
        %v422 = vunpack.c.l.b16 %v203
        %v423 = vunpack.c.l.b16 %v204
        %v424 = vunpack.c.l.b16 %v205
        %v425 = vunpack.c.l.b16 %v206
        %v426 = vunpack.c.l.b16 %v207
        %v427 = vunpack.c.l.b16 %v208
        %v428 = vunpack.c.l.b16 %v209
        %v429 = vunpack.c.l.b16 %v210
        %v430 = vpack.c.b16 %v415, %v414
        %v431 = vpack.c.b16 %v417, %v416
        %v432 = vpack.c.b16 %v419, %v418
        %v433 = vpack.c.b16 %v421, %v420
        %v434 = vpack.c.b16 %v423, %v422
        %v435 = vpack.c.b16 %v425, %v424
        %v436 = vpack.c.b16 %v427, %v426
        %v437 = vpack.c.b16 %v429, %v428
        %446 = vmatprep.subr.bf16.mxu0 0
        %447 = vmatpush1.bf16.msra.mxu0 %v437
        %448 = vmatprep.subr.bf16.mxu0 0
        %449 = vmatpush1.bf16.msra.mxu0 %v436
        %450 = vmatprep.subr.bf16.mxu0 0
        %451 = vmatpush1.bf16.msra.mxu0 %v435
        %452 = vmatprep.subr.bf16.mxu0 0
        %453 = vmatpush1.bf16.msra.mxu0 %v434
        %454 = vmatprep.subr.bf16.mxu0 0
        %455 = vmatpush1.bf16.msra.mxu0 %v433
        %456 = vmatprep.subr.bf16.mxu0 0
        %457 = vmatpush1.bf16.msra.mxu0 %v432
        %458 = vmatprep.subr.bf16.mxu0 0
        %459 = vmatpush1.bf16.msra.mxu0 %v431
        %460 = vmatprep.subr.bf16.mxu0 0
        %461 = vmatpush1.bf16.msra.mxu0 %v430
        %462 = vmatprep.subr.bf16.mxu0 0
        %463 = vmatpush2.bf16.msra.mxu0 0
        %464 = vmatprep.subr.bf16.mxu0 0
        %465 = vmatpush2.bf16.msra.mxu0 0
        %466 = vmatprep.subr.bf16.mxu0 0
        %467 = vmatpush2.bf16.msra.mxu0 0
        %468 = vmatprep.subr.bf16.mxu0 0
        %469 = vmatpush2.bf16.msra.mxu0 0
        %470 = vmatprep.subr.bf16.mxu0 0
        %471 = vmatpush2.bf16.msra.mxu0 0
        %472 = vmatprep.subr.bf16.mxu0 0
        %473 = vmatpush2.bf16.msra.mxu0 0
        %474 = vmatprep.subr.bf16.mxu0 0
        %475 = vmatpush2.bf16.msra.mxu0 0
        %476 = vmatprep.subr.bf16.mxu0 0
        %477 = vmatpush2.bf16.msra.mxu0 0
        %478 = vmatprep.mubr.bf16.mxu0 0
        %479 = vmatmul.mubr.bf16.gmra.mxu0 %v394
        %v480 = vpop.f32.mrf.mxu0
        %v481 = vadd.f32 %v372, %v480
        %v482 = vpop.f32.mrf.mxu0
        %v483 = vpop.f32.mrf.mxu0
        %v484 = vadd.f32 %v375, %v483
        %v485 = vpop.f32.mrf.mxu0
        %486 = vmatprep.mubr.bf16.mxu0 0
        %487 = vmatmul.mubr.bf16.gmra.mxu0 %v395
        %v488 = vpop.f32.mrf.mxu0
        %v489 = vadd.f32 %v380, %v488
        %v490 = vpop.f32.mrf.mxu0
        %v491 = vpop.f32.mrf.mxu0
        %v492 = vadd.f32 %v383, %v491
        %v493 = vpop.f32.mrf.mxu0
        %494 = vdwg.mxu0
        %v495 = vld [vmem:[%s187] sm:$0xe]
        %v496 = vld [vmem:[%s187 + $0xc] sm:$0xe]
        %vm501 = vcmask 1042432
        %vm502 = vcmask 1046532
        %vm503 = vmor %vm501, %vm502
        %v504 = vrot.slane %v495, 5
        %v505 = vrot.slane %v504, 4
        %v506 = vrot.slane %v192, 5
        %v507 = vsel %vm503, %v505, %v506
        %v508 = vrot.slane %v506, 4
        %v509 = vrot.slane %v211, 5
        %v510 = vsel %vm503, %v508, %v509
        %v511 = vrot.slane %v496, 5
        %v512 = vrot.slane %v511, 4
        %v513 = vrot.slane %v194, 5
        %v514 = vsel %vm503, %v512, %v513
        %v515 = vrot.slane %v513, 4
        %v516 = vrot.slane %v212, 5
        %v517 = vsel %vm503, %v515, %v516
        %s518 = scalar_lea.vmem [#allocation2], 128
        %v519 = vld [vmem:[%s518] sm:$0xf]
        %v520 = vld [vmem:[%s518 + $0x4] sm:$0xf]
        %v521 = vld [vmem:[%s518 + $0x8] sm:$0xf]
        %v522 = vld [vmem:[%s518 + $0xc] sm:$0xf]
        %v523 = vld [vmem:[%s518 + $0x10] sm:$0xf]
        %v524 = vld [vmem:[%s518 + $0x14] sm:$0xf]
        %v525 = vld [vmem:[%s518 + $0x18] sm:$0xf]
        %v526 = vld [vmem:[%s518 + $0x1c] sm:$0xf]
        %v527 = vld [vmem:[%s518 + $0x20] sm:$0xf]
        %v528 = vld [vmem:[%s518 + $0x24] sm:$0xf]
        %v529 = vld [vmem:[%s518 + $0x28] sm:$0xf]
        %v530 = vld [vmem:[%s518 + $0x2c] sm:$0xf]
        %v531 = vld [vmem:[%s518 + $0x30] sm:$0xf]
        %v532 = vld [vmem:[%s518 + $0x34] sm:$0xf]
        %v533 = vld [vmem:[%s518 + $0x38] sm:$0xf]
        %v534 = vld [vmem:[%s518 + $0x3c] sm:$0xf]
        %v535 = vunpack.c.l.b16 %v507
        %v536 = vunpack.c.l.b16 %v510
        %v537 = vunpack.c.l.b16 %v514
        %v538 = vunpack.c.l.b16 %v517
        %v539 = vpack.c.b16 %v536, %v535
        %v540 = vpack.c.b16 %v538, %v537
        %v559 = vunpack.c.l.b16 %v519
        %v560 = vunpack.c.l.b16 %v520
        %v561 = vunpack.c.l.b16 %v521
        %v562 = vunpack.c.l.b16 %v522
        %v563 = vunpack.c.l.b16 %v523
        %v564 = vunpack.c.l.b16 %v524
        %v565 = vunpack.c.l.b16 %v525
        %v566 = vunpack.c.l.b16 %v526
        %v567 = vunpack.c.l.b16 %v527
        %v568 = vunpack.c.l.b16 %v528
        %v569 = vunpack.c.l.b16 %v529
        %v570 = vunpack.c.l.b16 %v530
        %v571 = vunpack.c.l.b16 %v531
        %v572 = vunpack.c.l.b16 %v532
        %v573 = vunpack.c.l.b16 %v533
        %v574 = vunpack.c.l.b16 %v534
        %v575 = vpack.c.b16 %v560, %v559
        %v576 = vpack.c.b16 %v562, %v561
        %v577 = vpack.c.b16 %v564, %v563
        %v578 = vpack.c.b16 %v566, %v565
        %v579 = vpack.c.b16 %v568, %v567
        %v580 = vpack.c.b16 %v570, %v569
        %v581 = vpack.c.b16 %v572, %v571
        %v582 = vpack.c.b16 %v574, %v573
        %591 = vmatprep.subr.bf16.mxu0 0
        %592 = vmatpush1.bf16.msra.mxu0 %v582
        %593 = vmatprep.subr.bf16.mxu0 0
        %594 = vmatpush1.bf16.msra.mxu0 %v581
        %595 = vmatprep.subr.bf16.mxu0 0
        %596 = vmatpush1.bf16.msra.mxu0 %v580
        %597 = vmatprep.subr.bf16.mxu0 0
        %598 = vmatpush1.bf16.msra.mxu0 %v579
        %599 = vmatprep.subr.bf16.mxu0 0
        %600 = vmatpush1.bf16.msra.mxu0 %v578
        %601 = vmatprep.subr.bf16.mxu0 0
        %602 = vmatpush1.bf16.msra.mxu0 %v577
        %603 = vmatprep.subr.bf16.mxu0 0
        %604 = vmatpush1.bf16.msra.mxu0 %v576
        %605 = vmatprep.subr.bf16.mxu0 0
        %606 = vmatpush1.bf16.msra.mxu0 %v575
        %607 = vmatprep.subr.bf16.mxu0 0
        %608 = vmatpush2.bf16.msra.mxu0 0
        %609 = vmatprep.subr.bf16.mxu0 0
        %610 = vmatpush2.bf16.msra.mxu0 0
        %611 = vmatprep.subr.bf16.mxu0 0
        %612 = vmatpush2.bf16.msra.mxu0 0
        %613 = vmatprep.subr.bf16.mxu0 0
        %614 = vmatpush2.bf16.msra.mxu0 0
        %615 = vmatprep.subr.bf16.mxu0 0
        %616 = vmatpush2.bf16.msra.mxu0 0
        %617 = vmatprep.subr.bf16.mxu0 0
        %618 = vmatpush2.bf16.msra.mxu0 0
        %619 = vmatprep.subr.bf16.mxu0 0
        %620 = vmatpush2.bf16.msra.mxu0 0
        %621 = vmatprep.subr.bf16.mxu0 0
        %622 = vmatpush2.bf16.msra.mxu0 0
        %623 = vmatprep.mubr.bf16.mxu0 0
        %624 = vmatmul.mubr.bf16.gmra.mxu0 %v539
        %v625 = vpop.f32.mrf.mxu0
        %v626 = vadd.f32 0.0, %v625
        %v627 = vpop.f32.mrf.mxu0
        %v628 = vpop.f32.mrf.mxu0
        %v629 = vadd.f32 0.0, %v628
        %v630 = vpop.f32.mrf.mxu0
        %631 = vmatprep.mubr.bf16.mxu0 0
        %632 = vmatmul.mubr.bf16.gmra.mxu0 %v540
        %v633 = vpop.f32.mrf.mxu0
        %v634 = vadd.f32 0.0, %v633
        %v635 = vpop.f32.mrf.mxu0
        %v636 = vpop.f32.mrf.mxu0
        %v637 = vadd.f32 0.0, %v636
        %v638 = vpop.f32.mrf.mxu0
        %639 = vdwg.mxu0
        %v640 = vadd.f32 %v481, %v626
        %v641 = vadd.f32 %v484, %v629
        %v642 = vadd.f32 %v489, %v634
        %v643 = vadd.f32 %v492, %v637
        %v644 = vld [vmem:[%s2] sm:$0x1]
        %v646 = vlaneseq
        %v647 = vshrl.u32 %v646, 7
        %v648 = vsub.s32 0, %v647
        %v649 = vrot.slane %v644, %v648
        %v651 = vadd.f32 %v640, %v649
        %v652 = vadd.f32 %v641, %v649
        %v653 = vadd.f32 %v642, %v649
        %v654 = vadd.f32 %v643, %v649
        %v655 = vmax.f32 %v651, 0.0
        %v656 = vmax.f32 %v652, 0.0
        %v657 = vmax.f32 %v653, 0.0
        %v658 = vmax.f32 %v654, 0.0
        %659 = vst [vmem:[%s181] sm:$0xff] %v655
        %660 = vst [vmem:[%s181 + $0x8] sm:$0xff] %v656
        %661 = vst [vmem:[%s181 + $0x10] sm:$0xff] %v657
        %662 = vst [vmem:[%s181 + $0x18] sm:$0xff] %v658
        %s663 = sand.u32 %s94, 1
        %s664 = scalar_lea.sflag [#allocation4], %s663
        %s665 = sand.u32 %s94, 1
        %s666 = smul.addr %s665, 32
        %s667 = scalar_lea.vmem [#allocation5], %s666
        // Predicated region
        $region37: #{tpu_custom_call.1} parent=31 // pred_check
          %p668 = pneg %p104
        $region38: #{tpu_custom_call.1} parent=31 // pred_check_branch
          %670 = sbr.rel (%p668) target = $region40
        $region39: #{tpu_custom_call.1} parent=31 // pred_region
          %s671 = smul.u32 2, %s18
          %s673 = ssub.s32 512, 512
          %674 = vsyncadd %s664, %s673
          %s675 = smul.addr %s671, 2
          %s676 = smul.addr %s675, 128
          %s677 = scalar_lea.hbm %s3, %s676
          %s678 = sshll.u32 %s667, 4
          %s679 = int_to_ptr.vmem [resolvable:$true] %s678
          %684 = dma.vmem_to_hbm [thread:$0]  %s679, 512, %s677, %s664, 128, 128, 8
        $region40: #{tpu_custom_call.1} parent=31 // pred_fallthru
          _
      $region32: #{tpu_custom_call.1} parent=5 // pred_fallthru
        _
      %p685 = scmp.le.s32.totalorder 2, %s13
      // Predicated region
      $region41: #{tpu_custom_call.1} parent=5 // pred_check
        %p686 = pneg %p685
      $region42: #{tpu_custom_call.1} parent=5 // pred_check_branch
        %688 = sbr.rel (%p686) target = $region44
      $region43: #{tpu_custom_call.1} parent=5 // pred_region
        %s689 = ssub.s32 %s13, 2
        // Predicated region
        $region45: #{tpu_custom_call.1} parent=43 // pred_check
          %p690 = pneg %p110
        $region46: #{tpu_custom_call.1} parent=43 // pred_check_branch
          %692 = sbr.rel (%p690) target = $region48
        $region47: #{tpu_custom_call.1} parent=43 // pred_region
          %s693 = sand.u32 %s95, 1
          %s694 = scalar_lea.sflag [#allocation4], %s693
          %s695 = sand.u32 %s95, 1
          %s696 = smul.addr %s695, 32
          %s697 = scalar_lea.vmem [#allocation5], %s696
          %698 = dma.done %s694, 512
        $region48: #{tpu_custom_call.1} parent=43 // pred_fallthru
          _
      $region44: #{tpu_custom_call.1} parent=5 // pred_fallthru
        _
    $region6: #{tpu_custom_call.1} parent=1 // loop_footer
      %s17 = sadd.s32 1, %s13
    $region7: #{tpu_custom_call.1} parent=1 // loop_footer_branch
      %12 = sbr.rel target = $region3
    $region8: #{tpu_custom_call.1} parent=1 // loop_exit
      _
    %699 = vsyncpa [#allocation3], 1
    %s700 = scalar_lea.sflag [#allocation3], 1
    %701 = vsyncpa %s700, 1
    %702 = vsyncpa [#allocation4], 1
    %s703 = scalar_lea.sflag [#allocation4], 1
    %704 = vsyncpa %s703, 1

</llo_original>
